<compile_context>
chip_gen: v7x
topology: tpu7x:2x2x1
jax: 0.10.0
libtpu: 0.0.40
codegen_flags: <defaults>
</compile_context>

<pallas_src>
import math
import functools

import jax
import jax.numpy as jnp
from jax import lax
from jax.experimental import pallas as pl
from jax.experimental.pallas import tpu as pltpu


def _round_up(n: int, m: int) -> int:
    return ((n + m - 1) // m) * m


def _cdiv(a: int, b: int) -> int:
    return (a + b - 1) // b


def _pick_feature_tile(dim_padded: int, want: int) -> int:
    """Largest multiple of 128 <= want that divides dim_padded (dim_padded % 128 == 0)."""
    t = min(want, dim_padded)
    t = max((t // 128) * 128, 128)
    while dim_padded % t != 0:
        t -= 128
    return t


def _vmem_budget_and_cap():
    """(usable budget for tile planning, physical VMEM capacity) per generation."""
    cap = 64 << 20  # conservative fallback (v7x per-TC size)
    try:
        info = pltpu.get_tpu_info()
        cap = int(getattr(info, "vmem_capacity_bytes", cap))
    except Exception:
        pass
    # ~15% headroom for compiler-internal scratch / pipeline bookkeeping.
    budget = min(int(cap * 0.85), 112 << 20)
    return budget, cap


def _layer_norm_f32(h, g, b, eps, proj_valid):
    # Padded proj columns of h are exactly zero (zero-padded W1 columns), so
    # plain sums over the padded width divided by proj_valid are exact.
    # var = E[h^2] - mean^2 avoids a second masked pass over h.  Padded columns
    # come out as (0 - mean)*rsqrt*0 + 0 = 0 because gamma/beta padding is 0
    # (and W2's padded rows are zero anyway).
    inv_p = 1.0 / float(proj_valid)
    mean = jnp.sum(h, axis=-1, keepdims=True) * inv_p
    msq = jnp.sum(h * h, axis=-1, keepdims=True) * inv_p
    var = jnp.maximum(msq - mean * mean, 0.0)
    return (h - mean) * lax.rsqrt(var + eps) * g + b


def _srupp_kernel_fused(x_ref, w1t_ref, w2t_ref, g_ref, b_ref, o_ref, *,
                        use_layer_norm: bool, eps: float, proj_valid: int,
                        compute_dtype):
    # 1-D grid: everything for one row tile in a single step; W1^T/W2^T are
    # VMEM-resident (constant index_map, single-buffered).
    h = jnp.dot(x_ref[...], w1t_ref[...], preferred_element_type=jnp.float32)
    if use_layer_norm:
        h = _layer_norm_f32(h, g_ref[...], b_ref[...], eps, proj_valid)
    # dropout(p=0.0) is the identity (inference semantics).
    # TODO(synk): training-mode dropout (p > 0) would need pltpu.prng_seed /
    # pltpu.prng_random_bits masking here.
    o_ref[...] = jnp.dot(h.astype(compute_dtype), w2t_ref[...],
                         preferred_element_type=jnp.float32).astype(o_ref.dtype)


def _srupp_kernel_split(x_ref, w1t_ref, w2t_ref, g_ref, b_ref, o_ref, h_ref, *,
                        use_layer_norm: bool, eps: float, proj_valid: int):
    # 2-D fallback grid (row tiles x out-feature tiles) for shapes where a
    # resident W2 does not fit in VMEM.  h = LN(x @ W1^T) is computed once per
    # row tile (j == 0) into VMEM scratch and reused across out tiles.
    # NOTE: this relies on grid axis 1 iterating innermost & sequentially per
    # row tile (default row-major grid order; axis 1 is marked "arbitrary").
    @pl.when(pl.program_id(1) == 0)
    def _():
        h = jnp.dot(x_ref[...], w1t_ref[...], preferred_element_type=jnp.float32)
        if use_layer_norm:
            h = _layer_norm_f32(h, g_ref[...], b_ref[...], eps, proj_valid)
        h_ref[...] = h.astype(h_ref.dtype)

    o_ref[...] = jnp.dot(h_ref[...], w2t_ref[...],
                         preferred_element_type=jnp.float32).astype(o_ref.dtype)


def prepare_srupp_params(w1, w2, gamma=None, beta=None, *,
                         compute_dtype=jnp.bfloat16):
    """One-time parameter prep: transpose, zero-pad feature dims to 128, cast.

    w1: (proj_features, in_features)  == linear1.weight
    w2: (out_features, proj_features) == linear2.weight
    """
    proj_features, in_features = w1.shape
    out_features, proj2 = w2.shape
    assert proj2 == proj_features

    in_p = _round_up(in_features, 128)
    proj_p = _round_up(proj_features, 128)
    out_p = _round_up(out_features, 128)

    w1t = jnp.zeros((in_p, proj_p), compute_dtype)
    w1t = w1t.at[:in_features, :proj_features].set(w1.T.astype(compute_dtype))
    w2t = jnp.zeros((proj_p, out_p), compute_dtype)
    w2t = w2t.at[:proj_features, :out_features].set(w2.T.astype(compute_dtype))

    if gamma is None:
        gamma = jnp.ones((proj_features,), jnp.float32)
    if beta is None:
        beta = jnp.zeros((proj_features,), jnp.float32)
    g = jnp.zeros((1, proj_p), jnp.float32).at[0, :proj_features].set(
        gamma.astype(jnp.float32))
    b = jnp.zeros((1, proj_p), jnp.float32).at[0, :proj_features].set(
        beta.astype(jnp.float32))

    return dict(w1t=w1t, w2t=w2t, gamma=g, beta=b,
                in_features=in_features, proj_features=proj_features,
                out_features=out_features, compute_dtype=compute_dtype)


def srupp_projected_linear(x, params, *, use_layer_norm: bool = True,
                           eps: float = 1e-5,
                           tile_n: int = 512,      # row-tile target
                           tile_o: int = 1024,     # out-tile target (2-D fallback only)
                           out_dtype=None,         # e.g. jnp.bfloat16 to halve writeback
                           grid_mode: str = "auto"):  # "auto" | "1d" | "2d"
    """x: (L, B, in_features); params from prepare_srupp_params."""
    if grid_mode not in ("auto", "1d", "2d"):
        raise ValueError(f"bad grid_mode: {grid_mode}")
    L, B, in_features = x.shape
    assert in_features == params["in_features"]
    proj_features = params["proj_features"]
    out_features = params["out_features"]
    compute_dtype = params["compute_dtype"]
    w1t, w2t = params["w1t"], params["w2t"]
    g, b = params["gamma"], params["beta"]
    in_p, proj_p = w1t.shape
    out_p = w2t.shape[1]

    out_dtype = jnp.dtype(x.dtype if out_dtype is None else out_dtype)
    cbytes = jnp.dtype(compute_dtype).itemsize
    obytes = out_dtype.itemsize

    N = L * B
    budget, phys_cap = _vmem_budget_and_cap()

    # ---------------- per-step VMEM estimates (incl. pipeline buffers) -------
    def need_1d(tn):
        return (2 * tn * in_p * cbytes          # x, double-buffered
                + in_p * proj_p * cbytes        # W1^T, resident (Buffered(1))
                + proj_p * out_p * cbytes       # W2^T, resident (Buffered(1))
                + 2 * proj_p * 4                # gamma/beta
                + 2 * tn * out_p * obytes       # out, double-buffered
                + 2 * tn * proj_p * 4)          # f32 LayerNorm temporaries

    def need_2d(tn, to):
        return (3 * tn * in_p * cbytes          # x, Buffered(3)
                + in_p * proj_p * cbytes        # W1^T, resident (Buffered(1))
                + 2 * proj_p * to * cbytes      # W2^T column tiles, streamed
                + 2 * proj_p * 4
                + 2 * tn * to * obytes
                + tn * proj_p * cbytes          # h scratch (bf16)
                + 2 * tn * proj_p * 4)          # f32 LayerNorm temporaries

    tn0 = max(_round_up(min(max(tile_n, 8), max(N, 8)), 8), 8)

    # ---------------- plan selection -----------------------------------------
    use_1d = False
    tn = tn0
    to = out_p
    if grid_mode in ("auto", "1d"):
        tn = tn0
        while tn > 128 and need_1d(tn) > budget:
            tn = max(_round_up(tn // 2, 8), 128)
        use_1d = (grid_mode == "1d") or (need_1d(tn) <= budget)
    if not use_1d:
        tn = tn0
        to = _pick_feature_tile(out_p, tile_o)
        while need_2d(tn, to) > budget and (tn > 128 or to > 128):
            if to > 128:                 # prefer shrinking out tile; keep tn big
                to = _pick_feature_tile(out_p, to - 128)
            else:
                tn = max(_round_up(tn // 2, 8), 128)

    # Minimize row padding: redistribute rows over the tile count implied by tn
    # (can only shrink tn, so the VMEM fit above still holds).
    num_row_tiles = _cdiv(N, tn)
    tn = _round_up(_cdiv(N, num_row_tiles), 8)
    N_p = num_row_tiles * tn

    # ---------------- host-side prep (skip passes when already aligned) ------
    x2d = x.reshape(N, in_features).astype(compute_dtype)
    if (N_p, in_p) != (N, in_features):
        x2d = jnp.pad(x2d, ((0, N_p - N), (0, in_p - in_features)))

    # ---------------- specs / kernel ------------------------------------------
    if use_1d:
        grid = (num_row_tiles,)
        in_specs = [
            pl.BlockSpec((tn, in_p), lambda i: (i, 0)),
            pl.BlockSpec((in_p, proj_p), lambda i: (0, 0),
                         pipeline_mode=pl.Buffered(1)),
            pl.BlockSpec((proj_p, out_p), lambda i: (0, 0),
                         pipeline_mode=pl.Buffered(1)),
            pl.BlockSpec((1, proj_p), lambda i: (0, 0),
                         pipeline_mode=pl.Buffered(1)),
            pl.BlockSpec((1, proj_p), lambda i: (0, 0),
                         pipeline_mode=pl.Buffered(1)),
        ]
        out_specs = pl.BlockSpec((tn, out_p), lambda i: (i, 0))
        scratch_shapes = []
        kernel = functools.partial(
            _srupp_kernel_fused, use_layer_norm=use_layer_norm, eps=eps,
            proj_valid=proj_features, compute_dtype=compute_dtype)
        dim_sem = ("parallel",)
        vmem_need = need_1d(tn)
        w2_reads = 1
    else:
        grid = (num_row_tiles, out_p // to)
        in_specs = [
            pl.BlockSpec((tn, in_p), lambda i, j: (i, 0),
                         pipeline_mode=pl.Buffered(3)),
            pl.BlockSpec((in_p, proj_p), lambda i, j: (0, 0),
                         pipeline_mode=pl.Buffered(1)),
            pl.BlockSpec((proj_p, to), lambda i, j: (0, j)),
            pl.BlockSpec((1, proj_p), lambda i, j: (0, 0),
                         pipeline_mode=pl.Buffered(1)),
            pl.BlockSpec((1, proj_p), lambda i, j: (0, 0),
                         pipeline_mode=pl.Buffered(1)),
        ]
        out_specs = pl.BlockSpec((tn, to), lambda i, j: (i, j))
        scratch_shapes = [pltpu.VMEM((tn, proj_p), compute_dtype)]
        kernel = functools.partial(
            _srupp_kernel_split, use_layer_norm=use_layer_norm, eps=eps,
            proj_valid=proj_features)
        dim_sem = ("parallel", "arbitrary")
        vmem_need = need_2d(tn, to)
        w2_reads = num_row_tiles   # W2 re-streamed once per row tile

    # vmem_limit derived from the actual need (never silently below it),
    # clamped to this generation's physical capacity.
    vmem_limit = int(min(max(vmem_need + (8 << 20), 32 << 20), phys_cap))

    cost = pl.CostEstimate(
        flops=2 * N_p * (in_p * proj_p + proj_p * out_p),
        transcendentals=N_p if use_layer_norm else 0,
        bytes_accessed=int(N_p * in_p * cbytes
                           + in_p * proj_p * cbytes
                           + w2_reads * proj_p * out_p * cbytes
                           + 2 * proj_p * 4
                           + N_p * out_p * obytes))

    out2d = pl.pallas_call(
        kernel,
        out_shape=jax.ShapeDtypeStruct((N_p, out_p), out_dtype),
        grid_spec=pltpu.PrefetchScalarGridSpec(
            num_scalar_prefetch=0,
            grid=grid,
            in_specs=in_specs,
            out_specs=out_specs,
            scratch_shapes=scratch_shapes,
        ),
        compiler_params=pltpu.CompilerParams(
            dimension_semantics=dim_sem,
            vmem_limit_bytes=vmem_limit),
        cost_estimate=cost,
    )(x2d, w1t, w2t, g, b)

    if (N_p, out_p) != (N, out_features):
        out2d = out2d[:N, :out_features]
    return out2d.reshape(L, B, out_features)


def _xavier_uniform(key, fan_out, fan_in, dtype=jnp.float32):
    # matches torch.nn.init.xavier_uniform_ for a (fan_out, fan_in) weight
    bound = math.sqrt(6.0 / (fan_in + fan_out))
    return jax.random.uniform(key, (fan_out, fan_in), dtype=dtype,
                              minval=-bound, maxval=bound)


def _reference(x, w1, w2, gamma, beta, use_layer_norm, eps=1e-5,
               compute_dtype=jnp.bfloat16):
    # Same numerics as the kernel: bf16 matmul operands, f32 accumulation,
    # f32 LayerNorm (mirrors the PyTorch module's forward up to bf16 rounding).
    h = jnp.einsum("lbi,pi->lbp", x.astype(compute_dtype),
                   w1.astype(compute_dtype),
                   preferred_element_type=jnp.float32)
    if use_layer_norm:
        mean = jnp.mean(h, axis=-1, keepdims=True)
        var = jnp.mean((h - mean) ** 2, axis=-1, keepdims=True)
        h = (h - mean) * lax.rsqrt(var + eps) * gamma + beta
    out = jnp.einsum("lbp,op->lbo", h.astype(compute_dtype),
                     w2.astype(compute_dtype),
                     preferred_element_type=jnp.float32)
    return out.astype(x.dtype)


if __name__ == "__main__":
    # Small shapes consistent with SRU++ usage: (seq_len, batch, in_features)
    L, B = 8, 2
    in_features, proj_features, out_features = 32, 16, 32
    dropout_p = 0.0
    use_layer_norm = True

    key = jax.random.PRNGKey(0)
    kx, k1, k2, kx2, k3, k4, kg, kb = jax.random.split(key, 8)

    x = jax.random.normal(kx, (L, B, in_features), dtype=jnp.float32)

    # Deterministic parameter init mirroring reset_parameters():
    w1 = _xavier_uniform(k1, proj_features, in_features)    # linear1.weight
    w2 = _xavier_uniform(k2, out_features, proj_features)   # linear2.weight
    if dropout_p > 0:
        w2 = w2 * (1.0 - dropout_p) ** 0.5
    gamma = jnp.ones((proj_features,), dtype=jnp.float32)   # LayerNorm weight
    beta = jnp.zeros((proj_features,), dtype=jnp.float32)   # LayerNorm bias

    # One-time parameter prep (transpose/pad/cast happens once, not per call).
    params = prepare_srupp_params(w1, w2, gamma, beta)
    ref = _reference(x, w1, w2, gamma, beta, use_layer_norm)

    # 1) Default path: 1-D grid, W1/W2 resident in VMEM.
    out = jax.block_until_ready(
        srupp_projected_linear(x, params, use_layer_norm=use_layer_norm))
    assert out.shape == (L, B, out_features)
    assert jnp.allclose(out, ref, atol=2e-2, rtol=2e-2), \
        float(jnp.max(jnp.abs(out - ref)))

    # 2) Exercise the 2-D fallback grid (W2 streamed in column tiles).
    out2 = jax.block_until_ready(
        srupp_projected_linear(x, params, use_layer_norm=use_layer_norm,
                               grid_mode="2d"))
    assert jnp.allclose(out2, ref, atol=2e-2, rtol=2e-2), \
        float(jnp.max(jnp.abs(out2 - ref)))

    # 3) No-LayerNorm variant (layer_norm=False in the module).
    out3 = jax.block_until_ready(
        srupp_projected_linear(x, params, use_layer_norm=False))
    ref3 = _reference(x, w1, w2, gamma, beta, False)
    assert jnp.allclose(out3, ref3, atol=2e-2, rtol=2e-2), \
        float(jnp.max(jnp.abs(out3 - ref3)))

    # 4) Non-128-aligned feature dims + ragged rows exercise the zero-padding
    #    and affine-LN padding-exactness paths.
    L2, B2 = 5, 3
    in2, pf2, of2 = 48, 24, 40
    xb = jax.random.normal(kx2, (L2, B2, in2), dtype=jnp.float32)
    w1b = _xavier_uniform(k3, pf2, in2)
    w2b = _xavier_uniform(k4, of2, pf2)
    gb = jax.random.normal(kg, (pf2,), dtype=jnp.float32) * 0.1 + 1.0
    bb = jax.random.normal(kb, (pf2,), dtype=jnp.float32) * 0.1
    params_b = prepare_srupp_params(w1b, w2b, gb, bb)
    out4 = jax.block_until_ready(
        srupp_projected_linear(xb, params_b, use_layer_norm=True))
    ref4 = _reference(xb, w1b, w2b, gb, bb, True)
    assert out4.shape == (L2, B2, of2)
    assert jnp.allclose(out4, ref4, atol=2e-2, rtol=2e-2), \
        float(jnp.max(jnp.abs(out4 - ref4)))

    print("KERNEL_OK")
</pallas_src>

<mosaic_0001>
module attributes {stable_mosaic.version = 11 : i64} {
  func.func @_srupp_kernel_fused(%arg0: i32, %arg1: memref<16x128xbf16, #tpu.memory_space<vmem>>, %arg2: memref<128x128xbf16, #tpu.memory_space<vmem>>, %arg3: memref<128x128xbf16, #tpu.memory_space<vmem>>, %arg4: memref<1x128xf32, #tpu.memory_space<vmem>>, %arg5: memref<1x128xf32, #tpu.memory_space<vmem>>, %arg6: memref<16x128xf32, #tpu.memory_space<vmem>>) attributes {dimension_semantics = [#tpu.dimension_semantics<parallel>], iteration_bounds = array<i64: 1>, scalar_prefetch = 0 : i64, scratch_operands = 0 : i64, tpu.core_type = #tpu.core_type<tc>, window_params = [{transform_indices = @transform_0, window_bounds = array<i64: 16, 128>}, {pipeline_mode = #tpu.pipeline_mode<synchronous>, transform_indices = @transform_1, window_bounds = array<i64: 128, 128>}, {pipeline_mode = #tpu.pipeline_mode<synchronous>, transform_indices = @transform_2, window_bounds = array<i64: 128, 128>}, {pipeline_mode = #tpu.pipeline_mode<synchronous>, transform_indices = @transform_3, window_bounds = array<i64: 1, 128>}, {pipeline_mode = #tpu.pipeline_mode<synchronous>, transform_indices = @transform_4, window_bounds = array<i64: 1, 128>}, {transform_indices = @transform_5, window_bounds = array<i64: 16, 128>}]} {
    %c0 = arith.constant 0 : index
    %c0_0 = arith.constant 0 : index
    %0 = vector.load %arg1[%c0, %c0_0] : memref<16x128xbf16, #tpu.memory_space<vmem>>, vector<16x128xbf16>
    %c0_1 = arith.constant 0 : index
    %c0_2 = arith.constant 0 : index
    %1 = vector.load %arg2[%c0_1, %c0_2] : memref<128x128xbf16, #tpu.memory_space<vmem>>, vector<128x128xbf16>
    %cst = arith.constant dense<0.000000e+00> : vector<16x128xf32>
    %2 = tpu.matmul %0, %1, %cst {dimension_numbers = #tpu.dot_dimension_numbers<[1], [0], [0], [1], [0, 0, 1, 1], [], []>} : vector<16x128xbf16>, vector<128x128xbf16>, vector<16x128xf32> -> vector<16x128xf32>
    %c0_3 = arith.constant 0 : index
    %c0_4 = arith.constant 0 : index
    %3 = vector.load %arg4[%c0_3, %c0_4] : memref<1x128xf32, #tpu.memory_space<vmem>>, vector<1x128xf32>
    %c0_5 = arith.constant 0 : index
    %c0_6 = arith.constant 0 : index
    %4 = vector.load %arg5[%c0_5, %c0_6] : memref<1x128xf32, #tpu.memory_space<vmem>>, vector<1x128xf32>
    %cst_7 = arith.constant dense<0.000000e+00> : vector<16xf32>
    %5 = vector.multi_reduction <add>, %2, %cst_7 [1] : vector<16x128xf32> to vector<16xf32>
    %6 = vector.shape_cast %5 : vector<16xf32> to vector<16x1xf32>
    %cst_8 = arith.constant 6.250000e-02 : f32
    %7 = vector.broadcast %cst_8 : f32 to vector<16x1xf32>
    %8 = arith.mulf %6, %7 : vector<16x1xf32>
    %9 = arith.mulf %2, %2 : vector<16x128xf32>
    %cst_9 = arith.constant dense<0.000000e+00> : vector<16xf32>
    %10 = vector.multi_reduction <add>, %9, %cst_9 [1] : vector<16x128xf32> to vector<16xf32>
    %11 = vector.shape_cast %10 : vector<16xf32> to vector<16x1xf32>
    %cst_10 = arith.constant 6.250000e-02 : f32
    %12 = vector.broadcast %cst_10 : f32 to vector<16x1xf32>
    %13 = arith.mulf %11, %12 : vector<16x1xf32>
    %14 = arith.mulf %8, %8 : vector<16x1xf32>
    %15 = arith.subf %13, %14 : vector<16x1xf32>
    %cst_11 = arith.constant 0.000000e+00 : f32
    %16 = vector.broadcast %cst_11 : f32 to vector<16x1xf32>
    %17 = arith.maximumf %15, %16 : vector<16x1xf32>
    %18 = vector.broadcast %8 : vector<16x1xf32> to vector<16x128xf32>
    %19 = arith.subf %2, %18 : vector<16x128xf32>
    %cst_12 = arith.constant 9.99999974E-6 : f32
    %20 = vector.broadcast %cst_12 : f32 to vector<16x1xf32>
    %21 = arith.addf %17, %20 : vector<16x1xf32>
    %22 = math.rsqrt %21 : vector<16x1xf32>
    %23 = vector.broadcast %22 : vector<16x1xf32> to vector<16x128xf32>
    %24 = arith.mulf %19, %23 : vector<16x128xf32>
    %25 = vector.broadcast %3 : vector<1x128xf32> to vector<16x128xf32>
    %26 = arith.mulf %24, %25 : vector<16x128xf32>
    %27 = vector.broadcast %4 : vector<1x128xf32> to vector<16x128xf32>
    %28 = arith.addf %26, %27 : vector<16x128xf32>
    %29 = arith.truncf %28 : vector<16x128xf32> to vector<16x128xbf16>
    %c0_13 = arith.constant 0 : index
    %c0_14 = arith.constant 0 : index
    %30 = vector.load %arg3[%c0_13, %c0_14] : memref<128x128xbf16, #tpu.memory_space<vmem>>, vector<128x128xbf16>
    %cst_15 = arith.constant dense<0.000000e+00> : vector<16x128xf32>
    %31 = tpu.matmul %29, %30, %cst_15 {dimension_numbers = #tpu.dot_dimension_numbers<[1], [0], [0], [1], [0, 0, 1, 1], [], []>} : vector<16x128xbf16>, vector<128x128xbf16>, vector<16x128xf32> -> vector<16x128xf32>
    %c0_16 = arith.constant 0 : index
    %c0_17 = arith.constant 0 : index
    %32 = vector.load %arg6[%c0_16, %c0_17] : memref<16x128xf32, #tpu.memory_space<vmem>>, vector<16x128xf32>
    tpu.vector_store %arg6[%c0_16, %c0_17], %31 {strides = array<i32>} : memref<16x128xf32, #tpu.memory_space<vmem>>, vector<16x128xf32>,
    return
  }
  func.func @transform_0(%arg0: i32) -> (i32, i32) {
    %c0_i32 = arith.constant 0 : i32
    %c0_i32_0 = arith.constant 0 : i32
    return %arg0, %c0_i32 : i32, i32
  }
  func.func @transform_1(%arg0: i32) -> (i32, i32) {
    %c0_i32 = arith.constant 0 : i32
    %c0_i32_0 = arith.constant 0 : i32
    %c0_i32_1 = arith.constant 0 : i32
    return %c0_i32, %c0_i32_0 : i32, i32
  }
  func.func @transform_2(%arg0: i32) -> (i32, i32) {
    %c0_i32 = arith.constant 0 : i32
    %c0_i32_0 = arith.constant 0 : i32
    %c0_i32_1 = arith.constant 0 : i32
    return %c0_i32, %c0_i32_0 : i32, i32
  }
  func.func @transform_3(%arg0: i32) -> (i32, i32) {
    %c0_i32 = arith.constant 0 : i32
    %c0_i32_0 = arith.constant 0 : i32
    %c0_i32_1 = arith.constant 0 : i32
    return %c0_i32, %c0_i32_0 : i32, i32
  }
  func.func @transform_4(%arg0: i32) -> (i32, i32) {
    %c0_i32 = arith.constant 0 : i32
    %c0_i32_0 = arith.constant 0 : i32
    %c0_i32_1 = arith.constant 0 : i32
    return %c0_i32, %c0_i32_0 : i32, i32
  }
  func.func @transform_5(%arg0: i32) -> (i32, i32) {
    %c0_i32 = arith.constant 0 : i32
    %c0_i32_0 = arith.constant 0 : i32
    return %arg0, %c0_i32 : i32, i32
  }
}

</mosaic_0001>

<llo_original>
// kernel: tpu_custom_call.1
$region0: #{tpu_custom_call.1}
  #allocation0 [shape = 'u32[]', space=smem, size = 0x4, offset = 0x4, fixed_abs, tag = 'smem constant byte address 0x4 - core index']
  #allocation1 [shape = 'u32[144,128]{1,0:T(1,128)}', space=vmem, size = 0x12000, scoped, tag = 'internal scratch']
  %s0 = inlined_call_operand.hbm [shape: bf16[16,128], index: 0, kind: input, shape index: {}]
  %s1 = inlined_call_operand.hbm [shape: bf16[128,128], index: 1, kind: input, shape index: {}]
  %s2 = inlined_call_operand.hbm [shape: bf16[128,128], index: 2, kind: input, shape index: {}]
  %s3 = inlined_call_operand.vmem [shape: f32[1,128], index: 3, kind: input, shape index: {}]
  %s4 = inlined_call_operand.vmem [shape: f32[1,128], index: 4, kind: input, shape index: {}]
  %s5 = inlined_call_operand.hbm [shape: f32[16,128], index: 5, kind: output, shape index: {}]
  %s6 = sld [smem:[#allocation0]]
  $region42: #{tpu_custom_call.1} parent=0
    _
  %s8 = ssub.s32 1, %s6
  %s9 = scalar_select 0, %s8, %s6
  $region1: #{tpu_custom_call.1} parent=0
    #allocation2 [shape = 'u8[4096]{0}', space=vmem, size = 0x1000, scoped, tag = 'input window, operand 0, single buffered']
    #allocation3 [shape = 's32[1]{0}', space=sflag, size = 0x4, scoped, tag = 'scoped memory for tpu_custom_call.1']
    #allocation4 [shape = 's32[1]{0}', space=sflag, size = 0x4, scoped, tag = 'scoped memory for tpu_custom_call.1']
    #allocation5 [shape = 'u8[32768]{0}', space=vmem, size = 0x8000, scoped, tag = 'input window, operand 1, single buffered']
    #allocation6 [shape = 's32[1]{0}', space=sflag, size = 0x4, scoped, tag = 'scoped memory for tpu_custom_call.1']
    #allocation7 [shape = 'u8[32768]{0}', space=vmem, size = 0x8000, scoped, tag = 'input window, operand 2, single buffered']
    #allocation8 [shape = 'u8[8192]{0}', space=vmem, size = 0x2000, scoped, tag = 'output window, operand 0, single buffered']
    %10 = vsyncpa [#allocation3], 0
    %11 = vsyncpa [#allocation6], 0
    %12 = vsyncpa [#allocation4], 0
    // Predicated region
    $region2: #{tpu_custom_call.1} parent=1 // pred_check
      _
    $region3: #{tpu_custom_call.1} parent=1 // pred_check_branch
      %14 = sbr.rel (0) target = $region5
    $region4: #{tpu_custom_call.1} parent=1 // pred_region
      %s16 = ssub.s32 128, 128
      %17 = vsyncadd [#allocation3], %s16
      %s18 = sshll.u32 [#allocation2], 4
      %s19 = int_to_ptr.vmem [resolvable:$true] %s18
      %24 = dma.hbm_to_vmem [thread:$0]  %s0, 128, %s19, [#allocation3], 64, 64, 4
    $region5: #{tpu_custom_call.1} parent=1 // pred_fallthru
      _
    // Predicated region
    $region6: #{tpu_custom_call.1} parent=1 // pred_check
      _
    $region7: #{tpu_custom_call.1} parent=1 // pred_check_branch
      %26 = sbr.rel (0) target = $region9
    $region8: #{tpu_custom_call.1} parent=1 // pred_region
      %s28 = ssub.s32 1024, 1024
      %29 = vsyncadd [#allocation6], %s28
      %s30 = sshll.u32 [#allocation5], 4
      %s31 = int_to_ptr.vmem [resolvable:$true] %s30
      %36 = dma.hbm_to_vmem [thread:$0]  %s1, 1024, %s31, [#allocation6], 64, 64, 4
    $region9: #{tpu_custom_call.1} parent=1 // pred_fallthru
      _
    // Predicated region
    $region10: #{tpu_custom_call.1} parent=1 // pred_check
      _
    $region11: #{tpu_custom_call.1} parent=1 // pred_check_branch
      %38 = sbr.rel (0) target = $region13
    $region12: #{tpu_custom_call.1} parent=1 // pred_region
      %s40 = ssub.s32 1024, 1024
      %41 = vsyncadd [#allocation6], %s40
      %s42 = sshll.u32 [#allocation7], 4
      %s43 = int_to_ptr.vmem [resolvable:$true] %s42
      %48 = dma.hbm_to_vmem [thread:$0]  %s2, 1024, %s43, [#allocation6], 64, 64, 4
    $region13: #{tpu_custom_call.1} parent=1 // pred_fallthru
      _
    // Predicated region
    $region14: #{tpu_custom_call.1} parent=1 // pred_check
      _
    $region15: #{tpu_custom_call.1} parent=1 // pred_check_branch
      %50 = sbr.rel (0) target = $region17
    $region16: #{tpu_custom_call.1} parent=1 // pred_region
      _
    $region17: #{tpu_custom_call.1} parent=1 // pred_fallthru
      _
    // Predicated region
    $region18: #{tpu_custom_call.1} parent=1 // pred_check
      _
    $region19: #{tpu_custom_call.1} parent=1 // pred_check_branch
      %52 = sbr.rel (0) target = $region21
    $region20: #{tpu_custom_call.1} parent=1 // pred_region
      _
    $region21: #{tpu_custom_call.1} parent=1 // pred_fallthru
      _
    // Predicated region
    $region22: #{tpu_custom_call.1} parent=1 // pred_check
      _
    $region23: #{tpu_custom_call.1} parent=1 // pred_check_branch
      %54 = sbr.rel (0) target = $region25
    $region24: #{tpu_custom_call.1} parent=1 // pred_region
      %55 = dma.done [#allocation3], 128
    $region25: #{tpu_custom_call.1} parent=1 // pred_fallthru
      _
    // Predicated region
    $region26: #{tpu_custom_call.1} parent=1 // pred_check
      _
    $region27: #{tpu_custom_call.1} parent=1 // pred_check_branch
      %57 = sbr.rel (0) target = $region29
    $region28: #{tpu_custom_call.1} parent=1 // pred_region
      %58 = dma.done [#allocation6], 1024
    $region29: #{tpu_custom_call.1} parent=1 // pred_fallthru
      _
    // Predicated region
    $region30: #{tpu_custom_call.1} parent=1 // pred_check
      _
    $region31: #{tpu_custom_call.1} parent=1 // pred_check_branch
      %60 = sbr.rel (0) target = $region33
    $region32: #{tpu_custom_call.1} parent=1 // pred_region
      %61 = dma.done [#allocation6], 1024
    $region33: #{tpu_custom_call.1} parent=1 // pred_fallthru
      _
    %v63 = vld [vmem:[#allocation2] sm:$0xf]
    %v64 = vld [vmem:[#allocation2 + $0x4] sm:$0xf]
    %v65 = vld [vmem:[#allocation5] sm:$0xf]
    %v66 = vld [vmem:[#allocation5 + $0x4] sm:$0xf]
    %v67 = vld [vmem:[#allocation5 + $0x8] sm:$0xf]
    %v68 = vld [vmem:[#allocation5 + $0xc] sm:$0xf]
    %v69 = vld [vmem:[#allocation5 + $0x10] sm:$0xf]
    %v70 = vld [vmem:[#allocation5 + $0x14] sm:$0xf]
    %v71 = vld [vmem:[#allocation5 + $0x18] sm:$0xf]
    %v72 = vld [vmem:[#allocation5 + $0x1c] sm:$0xf]
    %v73 = vld [vmem:[#allocation5 + $0x20] sm:$0xf]
    %v74 = vld [vmem:[#allocation5 + $0x24] sm:$0xf]
    %v75 = vld [vmem:[#allocation5 + $0x28] sm:$0xf]
    %v76 = vld [vmem:[#allocation5 + $0x2c] sm:$0xf]
    %v77 = vld [vmem:[#allocation5 + $0x30] sm:$0xf]
    %v78 = vld [vmem:[#allocation5 + $0x34] sm:$0xf]
    %v79 = vld [vmem:[#allocation5 + $0x38] sm:$0xf]
    %v80 = vld [vmem:[#allocation5 + $0x3c] sm:$0xf]
    %v83 = vunpack.c.l.b16 %v63
    %v84 = vunpack.c.l.b16 %v64
    %v85 = vpack.c.b16 %v84, %v83
    %v103 = vunpack.c.l.b16 %v65
    %v104 = vunpack.c.l.b16 %v66
    %v105 = vunpack.c.l.b16 %v67
    %v106 = vunpack.c.l.b16 %v68
    %v107 = vunpack.c.l.b16 %v69
    %v108 = vunpack.c.l.b16 %v70
    %v109 = vunpack.c.l.b16 %v71
    %v110 = vunpack.c.l.b16 %v72
    %v111 = vunpack.c.l.b16 %v73
    %v112 = vunpack.c.l.b16 %v74
    %v113 = vunpack.c.l.b16 %v75
    %v114 = vunpack.c.l.b16 %v76
    %v115 = vunpack.c.l.b16 %v77
    %v116 = vunpack.c.l.b16 %v78
    %v117 = vunpack.c.l.b16 %v79
    %v118 = vunpack.c.l.b16 %v80
    %v119 = vpack.c.b16 %v104, %v103
    %v120 = vpack.c.b16 %v106, %v105
    %v121 = vpack.c.b16 %v108, %v107
    %v122 = vpack.c.b16 %v110, %v109
    %v123 = vpack.c.b16 %v112, %v111
    %v124 = vpack.c.b16 %v114, %v113
    %v125 = vpack.c.b16 %v116, %v115
    %v126 = vpack.c.b16 %v118, %v117
    %135 = vmatprep.subr.bf16.mxu0 0
    %136 = vmatpush1.bf16.msra.mxu0 %v119
    %137 = vmatprep.subr.bf16.mxu0 0
    %138 = vmatpush1.bf16.msra.mxu0 %v120
    %139 = vmatprep.subr.bf16.mxu0 0
    %140 = vmatpush1.bf16.msra.mxu0 %v121
    %141 = vmatprep.subr.bf16.mxu0 0
    %142 = vmatpush1.bf16.msra.mxu0 %v122
    %143 = vmatprep.subr.bf16.mxu0 0
    %144 = vmatpush1.bf16.msra.mxu0 %v123
    %145 = vmatprep.subr.bf16.mxu0 0
    %146 = vmatpush1.bf16.msra.mxu0 %v124
    %147 = vmatprep.subr.bf16.mxu0 0
    %148 = vmatpush1.bf16.msra.mxu0 %v125
    %149 = vmatprep.subr.bf16.mxu0 0
    %150 = vmatpush1.bf16.msra.mxu0 %v126
    %151 = vmatprep.subr.bf16.mxu0 0
    %152 = vmatpush1.bf16.msra.mxu0 0
    %153 = vmatprep.subr.bf16.mxu0 0
    %154 = vmatpush1.bf16.msra.mxu0 0
    %155 = vmatprep.subr.bf16.mxu0 0
    %156 = vmatpush1.bf16.msra.mxu0 0
    %157 = vmatprep.subr.bf16.mxu0 0
    %158 = vmatpush1.bf16.msra.mxu0 0
    %159 = vmatprep.subr.bf16.mxu0 0
    %160 = vmatpush1.bf16.msra.mxu0 0
    %161 = vmatprep.subr.bf16.mxu0 0
    %162 = vmatpush1.bf16.msra.mxu0 0
    %163 = vmatprep.subr.bf16.mxu0 0
    %164 = vmatpush1.bf16.msra.mxu0 0
    %165 = vmatprep.subr.bf16.mxu0 0
    %166 = vmatpush1.bf16.msra.mxu0 0
    %167 = vmatprep.mubr.bf16.mxu0 0
    %168 = vmatmul.mubr.bf16.gmra.mrb[0].mxu0 %v85
    %v169 = vpop.f32.mrb[0].mxu0
    %v170 = vadd.f32 0.0, %v169
    %v171 = vpop.f32.mrb[0].mxu0
    %v172 = vpop.f32.mrb[0].mxu0
    %v173 = vadd.f32 0.0, %v172
    %v174 = vpop.f32.mrb[0].mxu0
    %175 = vdwg.mxu0
    %v176 = vld [vmem:[%s3] sm:$0x1]
    %v177 = vld [vmem:[%s4] sm:$0x1]
    %178 = vadd.xlane.f32.xlu0 %v170
    %v179 = vpop.xlane.xlu0 %178
    %180 = vadd.xlane.f32.xlu0 %v173
    %v181 = vpop.xlane.xlu0 %180
    %v182 = vmul.f32 %v179, 0.0625
    %v183 = vmul.f32 %v181, 0.0625
    %v184 = vmul.f32 %v170, %v170
    %v185 = vmul.f32 %v173, %v173
    %186 = vadd.xlane.f32.xlu0 %v184
    %v187 = vpop.xlane.xlu0 %186
    %188 = vadd.xlane.f32.xlu0 %v185
    %v189 = vpop.xlane.xlu0 %188
    %v190 = vmul.f32 %v187, 0.0625
    %v191 = vmul.f32 %v189, 0.0625
    %v192 = vmul.f32 %v182, %v182
    %v193 = vmul.f32 %v183, %v183
    %v194 = vsub.f32 %v190, %v192
    %v195 = vsub.f32 %v191, %v193
    %v196 = vmax.f32 %v194, 0.0
    %v197 = vmax.f32 %v195, 0.0
    %v198 = vsub.f32 %v170, %v182
    %v199 = vsub.f32 %v173, %v183
    %v200 = vadd.f32 %v196, 1e-05
    %v201 = vadd.f32 %v197, 1e-05
    %v202 = vrsqrt.pop %v200
    %v203 = vrsqrt.pop %v201
    %v204 = vmul.f32 %v198, %v202
    %v205 = vmul.f32 %v199, %v203
    %v207 = vlaneseq
    %v208 = vshrl.u32 %v207, 7
    %v209 = vsub.s32 0, %v208
    %v210 = vrot.slane %v176, %v209
    %v212 = vmul.f32 %v204, %v210
    %v213 = vmul.f32 %v205, %v210
    %v215 = vlaneseq
    %v216 = vshrl.u32 %v215, 7
    %v217 = vsub.s32 0, %v216
    %v218 = vrot.slane %v177, %v217
    %v220 = vadd.f32 %v212, %v218
    %v221 = vadd.f32 %v213, %v218
    %v222 = vpack.c.bf16 %v221, %v220
    %v223 = vld [vmem:[#allocation7] sm:$0xf]
    %v224 = vld [vmem:[#allocation7 + $0x4] sm:$0xf]
    %v225 = vld [vmem:[#allocation7 + $0x8] sm:$0xf]
    %v226 = vld [vmem:[#allocation7 + $0xc] sm:$0xf]
    %v227 = vld [vmem:[#allocation7 + $0x10] sm:$0xf]
    %v228 = vld [vmem:[#allocation7 + $0x14] sm:$0xf]
    %v229 = vld [vmem:[#allocation7 + $0x18] sm:$0xf]
    %v230 = vld [vmem:[#allocation7 + $0x1c] sm:$0xf]
    %v231 = vld [vmem:[#allocation7 + $0x20] sm:$0xf]
    %v232 = vld [vmem:[#allocation7 + $0x24] sm:$0xf]
    %v233 = vld [vmem:[#allocation7 + $0x28] sm:$0xf]
    %v234 = vld [vmem:[#allocation7 + $0x2c] sm:$0xf]
    %v235 = vld [vmem:[#allocation7 + $0x30] sm:$0xf]
    %v236 = vld [vmem:[#allocation7 + $0x34] sm:$0xf]
    %v237 = vld [vmem:[#allocation7 + $0x38] sm:$0xf]
    %v238 = vld [vmem:[#allocation7 + $0x3c] sm:$0xf]
    %v255 = vunpack.c.l.b16 %v223
    %v256 = vunpack.c.l.b16 %v224
    %v257 = vunpack.c.l.b16 %v225
    %v258 = vunpack.c.l.b16 %v226
    %v259 = vunpack.c.l.b16 %v227
    %v260 = vunpack.c.l.b16 %v228
    %v261 = vunpack.c.l.b16 %v229
    %v262 = vunpack.c.l.b16 %v230
    %v263 = vunpack.c.l.b16 %v231
    %v264 = vunpack.c.l.b16 %v232
    %v265 = vunpack.c.l.b16 %v233
    %v266 = vunpack.c.l.b16 %v234
    %v267 = vunpack.c.l.b16 %v235
    %v268 = vunpack.c.l.b16 %v236
    %v269 = vunpack.c.l.b16 %v237
    %v270 = vunpack.c.l.b16 %v238
    %v271 = vpack.c.b16 %v256, %v255
    %v272 = vpack.c.b16 %v258, %v257
    %v273 = vpack.c.b16 %v260, %v259
    %v274 = vpack.c.b16 %v262, %v261
    %v275 = vpack.c.b16 %v264, %v263
    %v276 = vpack.c.b16 %v266, %v265
    %v277 = vpack.c.b16 %v268, %v267
    %v278 = vpack.c.b16 %v270, %v269
    %287 = vmatprep.subr.bf16.mxu0 0
    %288 = vmatpush1.bf16.msra.mxu0 %v271
    %289 = vmatprep.subr.bf16.mxu0 0
    %290 = vmatpush1.bf16.msra.mxu0 %v272
    %291 = vmatprep.subr.bf16.mxu0 0
    %292 = vmatpush1.bf16.msra.mxu0 %v273
    %293 = vmatprep.subr.bf16.mxu0 0
    %294 = vmatpush1.bf16.msra.mxu0 %v274
    %295 = vmatprep.subr.bf16.mxu0 0
    %296 = vmatpush1.bf16.msra.mxu0 %v275
    %297 = vmatprep.subr.bf16.mxu0 0
    %298 = vmatpush1.bf16.msra.mxu0 %v276
    %299 = vmatprep.subr.bf16.mxu0 0
    %300 = vmatpush1.bf16.msra.mxu0 %v277
    %301 = vmatprep.subr.bf16.mxu0 0
    %302 = vmatpush1.bf16.msra.mxu0 %v278
    %303 = vmatprep.subr.bf16.mxu0 0
    %304 = vmatpush1.bf16.msra.mxu0 0
    %305 = vmatprep.subr.bf16.mxu0 0
    %306 = vmatpush1.bf16.msra.mxu0 0
    %307 = vmatprep.subr.bf16.mxu0 0
    %308 = vmatpush1.bf16.msra.mxu0 0
    %309 = vmatprep.subr.bf16.mxu0 0
    %310 = vmatpush1.bf16.msra.mxu0 0
    %311 = vmatprep.subr.bf16.mxu0 0
    %312 = vmatpush1.bf16.msra.mxu0 0
    %313 = vmatprep.subr.bf16.mxu0 0
    %314 = vmatpush1.bf16.msra.mxu0 0
    %315 = vmatprep.subr.bf16.mxu0 0
    %316 = vmatpush1.bf16.msra.mxu0 0
    %317 = vmatprep.subr.bf16.mxu0 0
    %318 = vmatpush1.bf16.msra.mxu0 0
    %319 = vmatprep.mubr.bf16.mxu0 0
    %320 = vmatmul.mubr.bf16.gmra.mrb[0].mxu0 %v222
    %v321 = vpop.f32.mrb[0].mxu0
    %v322 = vadd.f32 0.0, %v321
    %v323 = vpop.f32.mrb[0].mxu0
    %v324 = vpop.f32.mrb[0].mxu0
    %v325 = vadd.f32 0.0, %v324
    %v326 = vpop.f32.mrb[0].mxu0
    %327 = vdwg.mxu0
    %328 = vst [vmem:[#allocation8] sm:$0xff] %v322
    %329 = vst [vmem:[#allocation8 + $0x8] sm:$0xff] %v325
    // Predicated region
    $region34: #{tpu_custom_call.1} parent=1 // pred_check
      _
    $region35: #{tpu_custom_call.1} parent=1 // pred_check_branch
      %331 = sbr.rel (0) target = $region37
    $region36: #{tpu_custom_call.1} parent=1 // pred_region
      %s333 = ssub.s32 256, 256
      %334 = vsyncadd [#allocation4], %s333
      %s335 = sshll.u32 [#allocation8], 4
      %s336 = int_to_ptr.vmem [resolvable:$true] %s335
      %341 = dma.vmem_to_hbm [thread:$0]  %s336, 256, %s5, [#allocation4], 128, 128, 8
    $region37: #{tpu_custom_call.1} parent=1 // pred_fallthru
      _
    // Predicated region
    $region38: #{tpu_custom_call.1} parent=1 // pred_check
      _
    $region39: #{tpu_custom_call.1} parent=1 // pred_check_branch
      %343 = sbr.rel (0) target = $region41
    $region40: #{tpu_custom_call.1} parent=1 // pred_region
      %344 = dma.done [#allocation4], 256
    $region41: #{tpu_custom_call.1} parent=1 // pred_fallthru
      _
    %345 = vsyncpa [#allocation3], 1
    %346 = vsyncpa [#allocation6], 1
    %347 = vsyncpa [#allocation4], 1

</llo_original>
